<compile_context>
chip_gen: v6e
topology: v6e:2x2x1
jax: 0.10.0
libtpu: 0.0.40
codegen_flags: <defaults>
</compile_context>

<pallas_src>
import functools
import math

import jax
import jax.numpy as jnp
from jax.experimental import pallas as pl
from jax.experimental.pallas import tpu as pltpu


# ---------------------------------------------------------------------------
# Interpolation-matrix construction (align_corners=True), always f32.
# ---------------------------------------------------------------------------
def _interp_matrix(in_size: int, out_size: int):
    """W of shape (out,in) s.t. W @ v is the 1-D bilinear resize of v."""
    if out_size == 1:
        src = jnp.zeros((1,), dtype=jnp.float32)
    else:
        src = jnp.arange(out_size, dtype=jnp.float32) * (
            (in_size - 1) / (out_size - 1)
        )
    i0 = jnp.clip(jnp.floor(src).astype(jnp.int32), 0, in_size - 1)
    i1 = jnp.minimum(i0 + 1, in_size - 1)
    frac = src - i0.astype(jnp.float32)
    oh0 = jax.nn.one_hot(i0, in_size, dtype=jnp.float32)
    oh1 = jax.nn.one_hot(i1, in_size, dtype=jnp.float32)
    return (1.0 - frac)[:, None] * oh0 + frac[:, None] * oh1


def _largest_divisor_leq(n: int, limit: int) -> int:
    limit = max(1, min(n, limit))
    for d in range(limit, 0, -1):
        if n % d == 0:
            return d
    return 1


def _vmem_limit_bytes() -> int:
    try:
        cap = pltpu.get_tpu_info().vmem_capacity_bytes
    except Exception:
        cap = 64 * 1024 * 1024  # conservative (v7x-sized) fallback
    # Leave headroom: ~96 MiB on 128-MiB parts (v5e/v6e), ~48 MiB on 64-MiB v7x.
    return int(min(96 * 1024 * 1024, cap * 3 // 4))


# ---------------------------------------------------------------------------
# Kernel A: small-spatial path, planes folded into the lane axis.
# ---------------------------------------------------------------------------
def _folded_kernel(x_ref, wh_ref, wwbd_ref, o_ref):
    # x_ref   : (H, TB*W)       TB planes side by side along lanes
    # wh_ref  : (Ho, H)         row-interp weights
    # wwbd_ref: (TB*W, TB*Wo)   block-diagonal column-interp weights
    # o_ref   : (Ho, TB*Wo)     lane-dense output block
    wh = wh_ref[...]
    wwbd = wwbd_ref[...]
    x = x_ref[...].astype(wh.dtype)
    u = jnp.dot(wh, x, preferred_element_type=jnp.float32)          # (Ho, TB*W)
    y = jnp.dot(u.astype(wwbd.dtype), wwbd,
                preferred_element_type=jnp.float32)                 # (Ho, TB*Wo)
    o_ref[...] = y.astype(o_ref.dtype)


# ---------------------------------------------------------------------------
# Kernel B: large-spatial path, TB planes per block in natural layout.
# ---------------------------------------------------------------------------
def _make_planes_kernel(tb, h, w, ho, wo, compute_dtype):
    fuse_wpass = (h % 8 == 0)  # merging (TB,H)->TB*H sublanes is layout-friendly

    def kernel(x_ref, wh_ref, ww_ref, o_ref):
        wh = wh_ref[...]
        ww = ww_ref[...]
        if fuse_wpass:
            x2 = x_ref[...].astype(compute_dtype).reshape(tb * h, w)
            # W-pass: one (TB*H, W) @ (W, Wo) MXU matmul, f32 accumulation.
            t = jnp.dot(x2, ww, preferred_element_type=jnp.float32)
            t = t.astype(compute_dtype).reshape(tb, h, wo)
            # H-pass: static short loop of large (Ho,H)@(H,Wo) matmuls.
            for bb in range(tb):
                y = jnp.dot(wh, t[bb], preferred_element_type=jnp.float32)
                o_ref[bb] = y.astype(o_ref.dtype)
        else:
            for bb in range(tb):
                xb = x_ref[bb].astype(compute_dtype)                   # (H, W)
                tbp = jnp.dot(xb, ww, preferred_element_type=jnp.float32)
                y = jnp.dot(wh, tbp.astype(compute_dtype),
                            preferred_element_type=jnp.float32)
                o_ref[bb] = y.astype(o_ref.dtype)

    return kernel


# ---------------------------------------------------------------------------
# Wrapper
# ---------------------------------------------------------------------------
def upsample_bilinear(x: jax.Array, ratio: int = 2) -> jax.Array:
    """Equivalent of UpSample(ratio).forward(x) for NCHW `x`."""
    n, c, h, w = x.shape
    ho, wo = h * ratio, w * ratio
    b = n * c

    compute_dtype = jnp.bfloat16 if x.dtype == jnp.bfloat16 else jnp.float32
    wh = _interp_matrix(h, ho).astype(compute_dtype)        # (Ho, H)
    ww = _interp_matrix(w, wo).T.astype(compute_dtype)      # (W, Wo)

    x_flat = x.reshape(b, h, w)
    vmem_limit = _vmem_limit_bytes()
    cparams = pltpu.CompilerParams(
        dimension_semantics=("parallel",),
        vmem_limit_bytes=vmem_limit,
    )

    # ---- choose the folded (lane-dense) path for small spatial sizes --------
    tb_folded = None
    if wo < 128:
        # TB must make both TB*W and TB*Wo multiples of 128 (or equal the full
        # array width, i.e. TB == B) to satisfy the (8,128) block constraint
        # and keep stores unmasked.
        req = max(128 // math.gcd(w, 128), 128 // math.gcd(wo, 128))
        lane_cap = 1024                       # keeps the block-diagonal Ww small
        tb_cap = max(req, lane_cap // max(wo, 1))
        if b * wo <= 1024:
            tb_folded = b                     # tiny problem: single grid step
        else:
            cand = (min(tb_cap, b) // req) * req
            while cand >= req:
                if b % cand == 0:
                    tb_folded = cand
                    break
                cand -= req

    if tb_folded is not None:
        tb = tb_folded
        wwbd = jnp.kron(jnp.eye(tb, dtype=ww.dtype), ww)            # (TB*W, TB*Wo)
        x_t = jnp.transpose(x_flat, (1, 0, 2)).reshape(h, b * w)    # (H, B*W)
        out_folded = pl.pallas_call(
            _folded_kernel,
            out_shape=jax.ShapeDtypeStruct((ho, b * wo), x.dtype),
            grid_spec=pltpu.PrefetchScalarGridSpec(
                num_scalar_prefetch=0,
                grid=(b // tb,),
                in_specs=[
                    pl.BlockSpec((h, tb * w), lambda i: (0, i)),
                    pl.BlockSpec((ho, h), lambda i: (0, 0)),
                    pl.BlockSpec((tb * w, tb * wo), lambda i: (0, 0)),
                ],
                out_specs=pl.BlockSpec((ho, tb * wo), lambda i: (0, i)),
            ),
            compiler_params=cparams,
        )(x_t, wh, wwbd)
        out_flat = jnp.transpose(out_folded.reshape(ho, b, wo), (1, 0, 2))
    else:
        # ---- natural-layout path (lane-dense already when Wo >= 128) --------
        itemsize = jnp.dtype(x.dtype).itemsize
        per_plane = h * w * itemsize + h * wo * 4 + ho * wo * max(itemsize, 4)
        block_budget = min(8 << 20, vmem_limit // 6)
        tb = _largest_divisor_leq(b, max(1, block_budget // per_plane))
        # Keep >= 2 grid steps so both v7x TensorCores get work.
        if b > 1 and b // tb < 2:
            tb = _largest_divisor_leq(b, b // 2)
        kernel = _make_planes_kernel(tb, h, w, ho, wo, compute_dtype)
        out_flat = pl.pallas_call(
            kernel,
            out_shape=jax.ShapeDtypeStruct((b, ho, wo), x.dtype),
            grid_spec=pltpu.PrefetchScalarGridSpec(
                num_scalar_prefetch=0,
                grid=(b // tb,),
                in_specs=[
                    pl.BlockSpec((tb, h, w), lambda i: (i, 0, 0)),
                    pl.BlockSpec((ho, h), lambda i: (0, 0)),
                    pl.BlockSpec((w, wo), lambda i: (0, 0)),
                ],
                out_specs=pl.BlockSpec((tb, ho, wo), lambda i: (i, 0, 0)),
            ),
            compiler_params=cparams,
        )(x_flat, wh, ww)

    return out_flat.reshape(n, c, ho, wo)


# ---------------------------------------------------------------------------
# Pure-JAX reference (gather-based bilinear, align_corners=True)
# ---------------------------------------------------------------------------
def _ref_bilinear(x, ratio):
    n, c, h, w = x.shape
    ho, wo = h * ratio, w * ratio
    ys = jnp.arange(ho, dtype=jnp.float32) * ((h - 1) / (ho - 1))
    xs = jnp.arange(wo, dtype=jnp.float32) * ((w - 1) / (wo - 1))
    y0 = jnp.floor(ys).astype(jnp.int32)
    y1 = jnp.minimum(y0 + 1, h - 1)
    fy = (ys - y0)[None, None, :, None]
    x0 = jnp.floor(xs).astype(jnp.int32)
    x1 = jnp.minimum(x0 + 1, w - 1)
    fx = (xs - x0)[None, None, None, :]
    xf = x.astype(jnp.float32)
    top = xf[:, :, y0][:, :, :, x0] * (1 - fx) + xf[:, :, y0][:, :, :, x1] * fx
    bot = xf[:, :, y1][:, :, :, x0] * (1 - fx) + xf[:, :, y1][:, :, :, x1] * fx
    return (top * (1 - fy) + bot * fy).astype(x.dtype)


if __name__ == "__main__":
    key = jax.random.PRNGKey(0)
    x = jax.random.normal(key, (2, 4, 16, 16), dtype=jnp.float32)

    up2 = jax.jit(functools.partial(upsample_bilinear, ratio=2))
    out = jax.block_until_ready(up2(x))

    ref = _ref_bilinear(x, ratio=2)
    assert out.shape == (2, 4, 32, 32), out.shape
    assert jnp.allclose(out, ref, atol=2e-5, rtol=1e-5), "mismatch vs reference"

    print("KERNEL_OK")
</pallas_src>

<mosaic_0001>
module attributes {stable_mosaic.version = 11 : i64} {
  func.func @_folded_kernel(%arg0: i32, %arg1: memref<16x128xf32, #tpu.memory_space<vmem>>, %arg2: memref<32x16xf32, #tpu.memory_space<vmem>>, %arg3: memref<128x256xf32, #tpu.memory_space<vmem>>, %arg4: memref<32x256xf32, #tpu.memory_space<vmem>>) attributes {dimension_semantics = [#tpu.dimension_semantics<parallel>], iteration_bounds = array<i64: 1>, scalar_prefetch = 0 : i64, scratch_operands = 0 : i64, tpu.core_type = #tpu.core_type<tc>, window_params = [{transform_indices = @transform_0, window_bounds = array<i64: 16, 128>}, {pipeline_mode = #tpu.pipeline_mode<synchronous>, transform_indices = @transform_1, window_bounds = array<i64: 32, 16>}, {pipeline_mode = #tpu.pipeline_mode<synchronous>, transform_indices = @transform_2, window_bounds = array<i64: 128, 256>}, {transform_indices = @transform_3, window_bounds = array<i64: 32, 256>}]} {
    %c0 = arith.constant 0 : index
    %c0_0 = arith.constant 0 : index
    %0 = vector.load %arg2[%c0, %c0_0] : memref<32x16xf32, #tpu.memory_space<vmem>>, vector<32x16xf32>
    %c0_1 = arith.constant 0 : index
    %c0_2 = arith.constant 0 : index
    %1 = vector.load %arg3[%c0_1, %c0_2] : memref<128x256xf32, #tpu.memory_space<vmem>>, vector<128x256xf32>
    %c0_3 = arith.constant 0 : index
    %c0_4 = arith.constant 0 : index
    %2 = vector.load %arg1[%c0_3, %c0_4] : memref<16x128xf32, #tpu.memory_space<vmem>>, vector<16x128xf32>
    %cst = arith.constant dense<0.000000e+00> : vector<32x128xf32>
    %3 = tpu.matmul %0, %2, %cst {dimension_numbers = #tpu.dot_dimension_numbers<[1], [0], [0], [1], [0, 0, 1, 1], [], []>} : vector<32x16xf32>, vector<16x128xf32>, vector<32x128xf32> -> vector<32x128xf32>
    %cst_5 = arith.constant dense<0.000000e+00> : vector<32x256xf32>
    %4 = tpu.matmul %3, %1, %cst_5 {dimension_numbers = #tpu.dot_dimension_numbers<[1], [0], [0], [1], [0, 0, 1, 1], [], []>} : vector<32x128xf32>, vector<128x256xf32>, vector<32x256xf32> -> vector<32x256xf32>
    %c0_6 = arith.constant 0 : index
    %c0_7 = arith.constant 0 : index
    %5 = vector.load %arg4[%c0_6, %c0_7] : memref<32x256xf32, #tpu.memory_space<vmem>>, vector<32x256xf32>
    tpu.vector_store %arg4[%c0_6, %c0_7], %4 {strides = array<i32>} : memref<32x256xf32, #tpu.memory_space<vmem>>, vector<32x256xf32>,
    return
  }
  func.func @transform_0(%arg0: i32) -> (i32, i32) {
    %c0_i32 = arith.constant 0 : i32
    %c0_i32_0 = arith.constant 0 : i32
    return %c0_i32, %arg0 : i32, i32
  }
  func.func @transform_1(%arg0: i32) -> (i32, i32) {
    %c0_i32 = arith.constant 0 : i32
    %c0_i32_0 = arith.constant 0 : i32
    %c0_i32_1 = arith.constant 0 : i32
    return %c0_i32, %c0_i32_0 : i32, i32
  }
  func.func @transform_2(%arg0: i32) -> (i32, i32) {
    %c0_i32 = arith.constant 0 : i32
    %c0_i32_0 = arith.constant 0 : i32
    %c0_i32_1 = arith.constant 0 : i32
    return %c0_i32, %c0_i32_0 : i32, i32
  }
  func.func @transform_3(%arg0: i32) -> (i32, i32) {
    %c0_i32 = arith.constant 0 : i32
    %c0_i32_0 = arith.constant 0 : i32
    return %c0_i32, %arg0 : i32, i32
  }
}

</mosaic_0001>

<llo_original>
// kernel: upsample_bilinear.1
$region0: #{upsample_bilinear.1}
  #allocation0 [shape = 'u32[]', space=smem, size = 0x4, offset = 0x4, fixed_abs, tag = 'smem constant byte address 0x4 - core index']
  #allocation1 [shape = 'u32[144,128]{1,0:T(1,128)}', space=vmem, size = 0x12000, scoped, tag = 'internal scratch']
  %s0 = inlined_call_operand.vmem [shape: f32[16,128], index: 0, kind: input, shape index: {}]
  %s1 = inlined_call_operand.vmem [shape: f32[32,16], index: 1, kind: input, shape index: {}]
  %s2 = inlined_call_operand.vmem [shape: f32[128,256], index: 2, kind: input, shape index: {}]
  %s3 = inlined_call_operand.vmem [shape: f32[32,256], index: 3, kind: output, shape index: {}]
  %s4 = sld [smem:[#allocation0]]
  $region22: #{upsample_bilinear.1} parent=0
    _
  %s6 = ssub.s32 1, %s4
  %s7 = scalar_select 0, %s6, %s4
  // Predicated region
  $region2: #{upsample_bilinear.1} parent=0 // pred_check
    _
  $region3: #{upsample_bilinear.1} parent=0 // pred_check_branch
    %9 = sbr.rel (0) target = $region5
  $region4: #{upsample_bilinear.1} parent=0 // pred_region
    _
  $region5: #{upsample_bilinear.1} parent=0 // pred_fallthru
    _
  // Predicated region
  $region6: #{upsample_bilinear.1} parent=0 // pred_check
    _
  $region7: #{upsample_bilinear.1} parent=0 // pred_check_branch
    %11 = sbr.rel (0) target = $region9
  $region8: #{upsample_bilinear.1} parent=0 // pred_region
    _
  $region9: #{upsample_bilinear.1} parent=0 // pred_fallthru
    _
  // Predicated region
  $region10: #{upsample_bilinear.1} parent=0 // pred_check
    _
  $region11: #{upsample_bilinear.1} parent=0 // pred_check_branch
    %13 = sbr.rel (0) target = $region13
  $region12: #{upsample_bilinear.1} parent=0 // pred_region
    _
  $region13: #{upsample_bilinear.1} parent=0 // pred_fallthru
    _
  %v14 = vld [vmem:[%s1] sm:$0xff]
  %v15 = vld [vmem:[%s1 + $0x8] sm:$0xff]
  %v16 = vld [vmem:[%s1 + $0x10] sm:$0xff]
  %v17 = vld [vmem:[%s1 + $0x18] sm:$0xff]
  %v18 = vld [vmem:[%s2] sm:$0xff]
  %v19 = vld [vmem:[%s2 + $0x8] sm:$0xff]
  %v20 = vld [vmem:[%s2 + $0x10] sm:$0xff]
  %v21 = vld [vmem:[%s2 + $0x18] sm:$0xff]
  %v22 = vld [vmem:[%s2 + $0x20] sm:$0xff]
  %v23 = vld [vmem:[%s2 + $0x28] sm:$0xff]
  %v24 = vld [vmem:[%s2 + $0x30] sm:$0xff]
  %v25 = vld [vmem:[%s2 + $0x38] sm:$0xff]
  %v26 = vld [vmem:[%s2 + $0x40] sm:$0xff]
  %v27 = vld [vmem:[%s2 + $0x48] sm:$0xff]
  %v28 = vld [vmem:[%s2 + $0x50] sm:$0xff]
  %v29 = vld [vmem:[%s2 + $0x58] sm:$0xff]
  %v30 = vld [vmem:[%s2 + $0x60] sm:$0xff]
  %v31 = vld [vmem:[%s2 + $0x68] sm:$0xff]
  %v32 = vld [vmem:[%s2 + $0x70] sm:$0xff]
  %v33 = vld [vmem:[%s2 + $0x78] sm:$0xff]
  %v34 = vld [vmem:[%s2 + $0x80] sm:$0xff]
  %v35 = vld [vmem:[%s2 + $0x88] sm:$0xff]
  %v36 = vld [vmem:[%s2 + $0x90] sm:$0xff]
  %v37 = vld [vmem:[%s2 + $0x98] sm:$0xff]
  %v38 = vld [vmem:[%s2 + $0xa0] sm:$0xff]
  %v39 = vld [vmem:[%s2 + $0xa8] sm:$0xff]
  %v40 = vld [vmem:[%s2 + $0xb0] sm:$0xff]
  %v41 = vld [vmem:[%s2 + $0xb8] sm:$0xff]
  %v42 = vld [vmem:[%s2 + $0xc0] sm:$0xff]
  %v43 = vld [vmem:[%s2 + $0xc8] sm:$0xff]
  %v44 = vld [vmem:[%s2 + $0xd0] sm:$0xff]
  %v45 = vld [vmem:[%s2 + $0xd8] sm:$0xff]
  %v46 = vld [vmem:[%s2 + $0xe0] sm:$0xff]
  %v47 = vld [vmem:[%s2 + $0xe8] sm:$0xff]
  %v48 = vld [vmem:[%s2 + $0xf0] sm:$0xff]
  %v49 = vld [vmem:[%s2 + $0xf8] sm:$0xff]
  %v50 = vld [vmem:[%s0] sm:$0xff]
  %v51 = vld [vmem:[%s0 + $0x8] sm:$0xff]
  %vm52 = vcmask 130048
  %v54 = vsel %vm52, %v14, 0
  %v57 = vsel %vm52, %v15, 0
  %v60 = vsel %vm52, %v16, 0
  %v63 = vsel %vm52, %v17, 0
  %65 = vmatprep.subr.mxu0 0.0
  %66 = vmatpush1.msra.mxu0 0.0
  %67 = vmatprep.subr.mxu0 0.0
  %68 = vmatpush1.msra.mxu0 0.0
  %69 = vmatprep.subr.mxu0 0.0
  %70 = vmatpush1.msra.mxu0 0.0
  %71 = vmatprep.subr.mxu0 0.0
  %72 = vmatpush1.msra.mxu0 0.0
  %73 = vmatprep.subr.mxu0 0.0
  %74 = vmatpush1.msra.mxu0 0.0
  %75 = vmatprep.subr.mxu0 0.0
  %76 = vmatpush1.msra.mxu0 0.0
  %77 = vmatprep.subr.mxu0 0.0
  %78 = vmatpush1.msra.mxu0 0.0
  %79 = vmatprep.subr.mxu0 0.0
  %80 = vmatpush1.msra.mxu0 0.0
  %81 = vmatprep.subr.mxu0 0.0
  %82 = vmatpush1.msra.mxu0 0.0
  %83 = vmatprep.subr.mxu0 0.0
  %84 = vmatpush1.msra.mxu0 0.0
  %85 = vmatprep.subr.mxu0 0.0
  %86 = vmatpush1.msra.mxu0 0.0
  %87 = vmatprep.subr.mxu0 0.0
  %88 = vmatpush1.msra.mxu0 0.0
  %89 = vmatprep.subr.mxu0 0.0
  %90 = vmatpush1.msra.mxu0 0.0
  %91 = vmatprep.subr.mxu0 0.0
  %92 = vmatpush1.msra.mxu0 0.0
  %93 = vmatprep.subr.mxu0 0.0
  %94 = vmatpush1.msra.mxu0 %v51
  %95 = vmatprep.subr.mxu0 0.0
  %96 = vmatpush1.msra.mxu0 %v50
  %97 = vmatprep.subr.mxu0 0.0
  %98 = vmatpush2.msra.mxu0 0.0
  %99 = vmatprep.subr.mxu0 0.0
  %100 = vmatpush2.msra.mxu0 0.0
  %101 = vmatprep.subr.mxu0 0.0
  %102 = vmatpush2.msra.mxu0 0.0
  %103 = vmatprep.subr.mxu0 0.0
  %104 = vmatpush2.msra.mxu0 0.0
  %105 = vmatprep.subr.mxu0 0.0
  %106 = vmatpush2.msra.mxu0 0.0
  %107 = vmatprep.subr.mxu0 0.0
  %108 = vmatpush2.msra.mxu0 0.0
  %109 = vmatprep.subr.mxu0 0.0
  %110 = vmatpush2.msra.mxu0 0.0
  %111 = vmatprep.subr.mxu0 0.0
  %112 = vmatpush2.msra.mxu0 0.0
  %113 = vmatprep.subr.mxu0 0.0
  %114 = vmatpush2.msra.mxu0 0.0
  %115 = vmatprep.subr.mxu0 0.0
  %116 = vmatpush2.msra.mxu0 0.0
  %117 = vmatprep.subr.mxu0 0.0
  %118 = vmatpush2.msra.mxu0 0.0
  %119 = vmatprep.subr.mxu0 0.0
  %120 = vmatpush2.msra.mxu0 0.0
  %121 = vmatprep.subr.mxu0 0.0
  %122 = vmatpush2.msra.mxu0 0.0
  %123 = vmatprep.subr.mxu0 0.0
  %124 = vmatpush2.msra.mxu0 0.0
  %125 = vmatprep.subr.mxu0 0.0
  %126 = vmatpush2.msra.mxu0 0.0
  %127 = vmatprep.subr.mxu0 0.0
  %128 = vmatpush2.msra.mxu0 0.0
  %129 = vmatprep.mubr.f32.mxu0 0.0
  %130 = vmatmul.mubr.f32.gmra.mxu0 %v54
  %v131 = vpop.f32.mrf.mxu0
  %v132 = vadd.f32 0.0, %v131
  %v133 = vpop.f32.mrf.mxu0
  %134 = vmatprep.mubr.f32.mxu0 0.0
  %135 = vmatmul.mubr.f32.gmra.mxu0 %v57
  %v136 = vpop.f32.mrf.mxu0
  %v137 = vadd.f32 0.0, %v136
  %v138 = vpop.f32.mrf.mxu0
  %139 = vmatprep.mubr.f32.mxu0 0.0
  %140 = vmatmul.mubr.f32.gmra.mxu0 %v60
  %v141 = vpop.f32.mrf.mxu0
  %v142 = vadd.f32 0.0, %v141
  %v143 = vpop.f32.mrf.mxu0
  %144 = vmatprep.mubr.f32.mxu0 0.0
  %145 = vmatmul.mubr.f32.gmra.mxu0 %v63
  %v146 = vpop.f32.mrf.mxu0
  %v147 = vadd.f32 0.0, %v146
  %v148 = vpop.f32.mrf.mxu0
  %149 = vdwg.mxu0
  %150 = vmatprep.subr.mxu0 %v49
  %151 = vmatpush1.msra.mxu0 %v48
  %152 = vmatprep.subr.mxu0 %v47
  %153 = vmatpush1.msra.mxu0 %v46
  %154 = vmatprep.subr.mxu0 %v45
  %155 = vmatpush1.msra.mxu0 %v44
  %156 = vmatprep.subr.mxu0 %v43
  %157 = vmatpush1.msra.mxu0 %v42
  %158 = vmatprep.subr.mxu0 %v41
  %159 = vmatpush1.msra.mxu0 %v40
  %160 = vmatprep.subr.mxu0 %v39
  %161 = vmatpush1.msra.mxu0 %v38
  %162 = vmatprep.subr.mxu0 %v37
  %163 = vmatpush1.msra.mxu0 %v36
  %164 = vmatprep.subr.mxu0 %v35
  %165 = vmatpush1.msra.mxu0 %v34
  %166 = vmatprep.subr.mxu0 %v33
  %167 = vmatpush1.msra.mxu0 %v32
  %168 = vmatprep.subr.mxu0 %v31
  %169 = vmatpush1.msra.mxu0 %v30
  %170 = vmatprep.subr.mxu0 %v29
  %171 = vmatpush1.msra.mxu0 %v28
  %172 = vmatprep.subr.mxu0 %v27
  %173 = vmatpush1.msra.mxu0 %v26
  %174 = vmatprep.subr.mxu0 %v25
  %175 = vmatpush1.msra.mxu0 %v24
  %176 = vmatprep.subr.mxu0 %v23
  %177 = vmatpush1.msra.mxu0 %v22
  %178 = vmatprep.subr.mxu0 %v21
  %179 = vmatpush1.msra.mxu0 %v20
  %180 = vmatprep.subr.mxu0 %v19
  %181 = vmatpush1.msra.mxu0 %v18
  %182 = vmatprep.subr.mxu0 0.0
  %183 = vmatpush2.msra.mxu0 0.0
  %184 = vmatprep.subr.mxu0 0.0
  %185 = vmatpush2.msra.mxu0 0.0
  %186 = vmatprep.subr.mxu0 0.0
  %187 = vmatpush2.msra.mxu0 0.0
  %188 = vmatprep.subr.mxu0 0.0
  %189 = vmatpush2.msra.mxu0 0.0
  %190 = vmatprep.subr.mxu0 0.0
  %191 = vmatpush2.msra.mxu0 0.0
  %192 = vmatprep.subr.mxu0 0.0
  %193 = vmatpush2.msra.mxu0 0.0
  %194 = vmatprep.subr.mxu0 0.0
  %195 = vmatpush2.msra.mxu0 0.0
  %196 = vmatprep.subr.mxu0 0.0
  %197 = vmatpush2.msra.mxu0 0.0
  %198 = vmatprep.subr.mxu0 0.0
  %199 = vmatpush2.msra.mxu0 0.0
  %200 = vmatprep.subr.mxu0 0.0
  %201 = vmatpush2.msra.mxu0 0.0
  %202 = vmatprep.subr.mxu0 0.0
  %203 = vmatpush2.msra.mxu0 0.0
  %204 = vmatprep.subr.mxu0 0.0
  %205 = vmatpush2.msra.mxu0 0.0
  %206 = vmatprep.subr.mxu0 0.0
  %207 = vmatpush2.msra.mxu0 0.0
  %208 = vmatprep.subr.mxu0 0.0
  %209 = vmatpush2.msra.mxu0 0.0
  %210 = vmatprep.subr.mxu0 0.0
  %211 = vmatpush2.msra.mxu0 0.0
  %212 = vmatprep.subr.mxu0 0.0
  %213 = vmatpush2.msra.mxu0 0.0
  %214 = vmatprep.mubr.f32.mxu0 0.0
  %215 = vmatmul.mubr.f32.gmra.mxu0 %v132
  %v216 = vpop.f32.mrf.mxu0
  %v217 = vadd.f32 0.0, %v216
  %v218 = vpop.f32.mrf.mxu0
  %v219 = vadd.f32 0.0, %v218
  %220 = vmatprep.mubr.f32.mxu0 0.0
  %221 = vmatmul.mubr.f32.gmra.mxu0 %v137
  %v222 = vpop.f32.mrf.mxu0
  %v223 = vadd.f32 0.0, %v222
  %v224 = vpop.f32.mrf.mxu0
  %v225 = vadd.f32 0.0, %v224
  %226 = vmatprep.mubr.f32.mxu0 0.0
  %227 = vmatmul.mubr.f32.gmra.mxu0 %v142
  %v228 = vpop.f32.mrf.mxu0
  %v229 = vadd.f32 0.0, %v228
  %v230 = vpop.f32.mrf.mxu0
  %v231 = vadd.f32 0.0, %v230
  %232 = vmatprep.mubr.f32.mxu0 0.0
  %233 = vmatmul.mubr.f32.gmra.mxu0 %v147
  %v234 = vpop.f32.mrf.mxu0
  %v235 = vadd.f32 0.0, %v234
  %v236 = vpop.f32.mrf.mxu0
  %v237 = vadd.f32 0.0, %v236
  %238 = vdwg.mxu0
  %239 = vst [vmem:[%s3] sm:$0xff] %v217
  %240 = vst [vmem:[%s3 + $0x8] sm:$0xff] %v219
  %241 = vst [vmem:[%s3 + $0x10] sm:$0xff] %v223
  %242 = vst [vmem:[%s3 + $0x18] sm:$0xff] %v225
  %243 = vst [vmem:[%s3 + $0x20] sm:$0xff] %v229
  %244 = vst [vmem:[%s3 + $0x28] sm:$0xff] %v231
  %245 = vst [vmem:[%s3 + $0x30] sm:$0xff] %v235
  %246 = vst [vmem:[%s3 + $0x38] sm:$0xff] %v237
  // Predicated region
  $region14: #{upsample_bilinear.1} parent=0 // pred_check
    _
  $region15: #{upsample_bilinear.1} parent=0 // pred_check_branch
    %248 = sbr.rel (0) target = $region17
  $region16: #{upsample_bilinear.1} parent=0 // pred_region
    _
  $region17: #{upsample_bilinear.1} parent=0 // pred_fallthru
    _
  // Predicated region
  $region18: #{upsample_bilinear.1} parent=0 // pred_check
    _
  $region19: #{upsample_bilinear.1} parent=0 // pred_check_branch
    %250 = sbr.rel (0) target = $region21
  $region20: #{upsample_bilinear.1} parent=0 // pred_region
    _
  $region21: #{upsample_bilinear.1} parent=0 // pred_fallthru
    _

</llo_original>
